<compile_context>
chip_gen: v7x
topology: tpu7x:2x2x1
jax: 0.10.0
libtpu: 0.0.40
codegen_flags: <defaults>
</compile_context>

<pallas_src>
import jax
import jax.numpy as jnp
from jax.experimental import pallas as pl
from jax.experimental.pallas import tpu as pltpu


def _temp_scaled_head_kernel(temp_ref, x_ref, w_ref, b_ref, o_ref):
    # temp_ref: [1]      f32 SMEM (scalar prefetch)  -- temperature
    # x_ref:    [tm, tk] f32  VMEM                   -- activations tile
    # w_ref:    [tk, tn] bf16 VMEM                   -- weight tile (pre-cast once)
    # b_ref:    [1,  tn] f32  VMEM                   -- bias tile
    # o_ref:    [tm, tn] f32  VMEM                   -- logits tile; doubles as the
    #                                                   K accumulator (resident across k)
    k = pl.program_id(2)

    @pl.when(k == 0)
    def _init():
        o_ref[...] = jnp.broadcast_to(b_ref[...], o_ref.shape)   # bias as init value

    o_ref[...] += jnp.dot(
        x_ref[...].astype(jnp.bfloat16),      # in-VMEM cast, hidden under the MXU
        w_ref[...],
        preferred_element_type=jnp.float32,
    )

    @pl.when(k == pl.num_programs(2) - 1)
    def _epilogue():
        o_ref[...] = o_ref[...] * (1.0 / temp_ref[0])             # scalar divide, once


def _round_up(x, m):
    return ((x + m - 1) // m) * m


def _pick_vmem_limit_bytes():
    # Generation-aware scoped-VMEM limit: ~3/4 of physical, capped at 64 MiB.
    # v5e/v6e (128 MiB physical) -> 64 MiB; v7x (64 MiB physical) -> 48 MiB.
    try:
        cap = int(getattr(pltpu.get_tpu_info(), "vmem_capacity_bytes", 64 << 20))
    except Exception:
        cap = 64 << 20
    return int(min(cap * 3 // 4, 64 << 20))


def make_temperature_scaled_head(weight, bias, *, tk_target=2048):
    """One-time preparation of the classifier head (pad + bf16 cast of the weight),
    returning a jitted forward(x_nchw, temperature) -> logits / temperature."""
    D, N = weight.shape
    Np = _round_up(N, 128)

    # Tight K tiling: choose the number of K steps first, then a 128-aligned tile
    # size, so K padding stays < 128 (never up to tk_target - 1).
    Dp128 = _round_up(D, 128)
    kt = pl.cdiv(Dp128, tk_target)
    tk = _round_up(pl.cdiv(Dp128, kt), 128)
    Dp = kt * tk

    # Lane-dense N tile: full 256-wide MXU feed for big heads, but keep >= 2 N tiles
    # when Np == 256 so v7x's two TensorCores both get work.
    tn = 256 if Np >= 512 else 128

    # Pad / cast ONCE, outside the per-call hot path (no per-call weight HBM pass).
    w_pad = jnp.pad(weight, ((0, Dp - D), (0, Np - N))).astype(jnp.bfloat16)
    b_pad = jnp.pad(bias, (0, Np - N)).reshape(1, Np).astype(jnp.float32)
    w_pad = jax.block_until_ready(w_pad)
    b_pad = jax.block_until_ready(b_pad)

    vmem_limit = _pick_vmem_limit_bytes()

    def forward(x_nchw, temperature):
        B = x_nchw.shape[0]
        x_flat = x_nchw.reshape(B, -1)
        assert x_flat.shape[1] == D, "input feature size mismatch"

        if B <= 128:
            Bp = _round_up(B, 8)        # f32 sublane granularity
            tm = Bp
        else:
            tm = 128
            Bp = _round_up(B, tm)

        # Activations stay f32 (negligible bytes at head-sized B); zero-pad only.
        x_pad = jnp.pad(x_flat, ((0, Bp - B), (0, Dp - D)))
        temp = temperature.reshape(1).astype(jnp.float32)
        # TODO(synk): no guard for temperature == 0 (matches the PyTorch module).

        grid = (Bp // tm, Np // tn, Dp // tk)

        out_padded = pl.pallas_call(
            _temp_scaled_head_kernel,
            out_shape=jax.ShapeDtypeStruct((Bp, Np), jnp.float32),
            grid_spec=pltpu.PrefetchScalarGridSpec(
                num_scalar_prefetch=1,                               # temperature -> SMEM
                grid=grid,
                in_specs=[
                    pl.BlockSpec((tm, tk), lambda i, j, k, t: (i, k)),  # x (f32)
                    pl.BlockSpec((tk, tn), lambda i, j, k, t: (k, j)),  # weight (bf16)
                    pl.BlockSpec((1, tn), lambda i, j, k, t: (0, j)),   # bias (f32)
                ],
                out_specs=pl.BlockSpec((tm, tn), lambda i, j, k, t: (i, j)),
            ),
            compiler_params=pltpu.CompilerParams(
                dimension_semantics=("parallel", "parallel", "arbitrary"),
                vmem_limit_bytes=vmem_limit,
            ),
        )(temp, x_pad, w_pad, b_pad)

        return out_padded[:B, :N]

    return jax.jit(forward)


if __name__ == "__main__":
    # Small shapes consistent with an NCHW classifier input.
    B, C, H, W = 2, 4, 16, 16
    D = C * H * W
    NUM_CLASSES = 16

    key = jax.random.PRNGKey(0)
    kx, kw = jax.random.split(key, 2)

    x = jax.random.normal(kx, (B, C, H, W), dtype=jnp.float32)
    # Deterministic synthetic "network" params (Linear D -> NUM_CLASSES).
    weight = jax.random.normal(kw, (D, NUM_CLASSES), dtype=jnp.float32) * 0.02
    bias = jnp.zeros((NUM_CLASSES,), dtype=jnp.float32)
    # nn.Parameter(torch.ones(1) * 1.5)
    temperature = jnp.ones((1,), dtype=jnp.float32) * 1.5

    forward = make_temperature_scaled_head(weight, bias)   # one-time weight prep
    out = forward(x, temperature)
    out = jax.block_until_ready(out)

    # Reference with the same bf16-input / f32-accumulate math as the MXU path.
    xb = x.reshape(B, D).astype(jnp.bfloat16).astype(jnp.float32)
    wb = weight.astype(jnp.bfloat16).astype(jnp.float32)
    ref = (xb @ wb + bias[None, :]) / temperature[0]

    assert out.shape == (B, NUM_CLASSES)
    assert jnp.allclose(out, ref, atol=2e-3, rtol=2e-3)

    print("KERNEL_OK")
</pallas_src>

<mosaic_0001>
module attributes {stable_mosaic.version = 11 : i64} {
  func.func @_temp_scaled_head_kernel(%arg0: i32, %arg1: i32, %arg2: i32, %arg3: memref<1xf32, #tpu.memory_space<smem>>, %arg4: memref<8x1024xf32, #tpu.memory_space<vmem>>, %arg5: memref<1024x128xbf16, #tpu.memory_space<vmem>>, %arg6: memref<1x128xf32, #tpu.memory_space<vmem>>, %arg7: memref<8x128xf32, #tpu.memory_space<vmem>>) attributes {dimension_semantics = [#tpu.dimension_semantics<parallel>, #tpu.dimension_semantics<parallel>, #tpu.dimension_semantics<arbitrary>], iteration_bounds = array<i64: 1, 1, 1>, scalar_prefetch = 1 : i64, scratch_operands = 0 : i64, tpu.core_type = #tpu.core_type<tc>, window_params = [{transform_indices = @transform_0, window_bounds = array<i64: 8, 1024>}, {transform_indices = @transform_1, window_bounds = array<i64: 1024, 128>}, {transform_indices = @transform_2, window_bounds = array<i64: 1, 128>}, {transform_indices = @transform_3, window_bounds = array<i64: 8, 128>}]} {
    %c0_i32 = arith.constant 0 : i32
    %0 = arith.cmpi eq, %arg2, %c0_i32 : i32
    %1 = arith.extui %0 : i1 to i32
    %c0_i32_0 = arith.constant 0 : i32
    %2 = arith.cmpi ne, %1, %c0_i32_0 : i32
    scf.if %2 {
      %c0_10 = arith.constant 0 : index
      %c0_11 = arith.constant 0 : index
      %13 = vector.load %arg6[%c0_10, %c0_11] : memref<1x128xf32, #tpu.memory_space<vmem>>, vector<1x128xf32>
      %14 = vector.shape_cast %13 : vector<1x128xf32> to vector<1x128xf32>
      %15 = vector.broadcast %14 : vector<1x128xf32> to vector<8x128xf32>
      %c0_12 = arith.constant 0 : index
      %c0_13 = arith.constant 0 : index
      %16 = vector.load %arg7[%c0_12, %c0_13] : memref<8x128xf32, #tpu.memory_space<vmem>>, vector<8x128xf32>
      tpu.vector_store %arg7[%c0_12, %c0_13], %15 {strides = array<i32>} : memref<8x128xf32, #tpu.memory_space<vmem>>, vector<8x128xf32>,
    } else {
    }
    %c0 = arith.constant 0 : index
    %c0_1 = arith.constant 0 : index
    %3 = vector.load %arg7[%c0, %c0_1] : memref<8x128xf32, #tpu.memory_space<vmem>>, vector<8x128xf32>
    %c0_2 = arith.constant 0 : index
    %c0_3 = arith.constant 0 : index
    %4 = vector.load %arg4[%c0_2, %c0_3] : memref<8x1024xf32, #tpu.memory_space<vmem>>, vector<8x1024xf32>
    %5 = arith.truncf %4 : vector<8x1024xf32> to vector<8x1024xbf16>
    %c0_4 = arith.constant 0 : index
    %c0_5 = arith.constant 0 : index
    %6 = vector.load %arg5[%c0_4, %c0_5] : memref<1024x128xbf16, #tpu.memory_space<vmem>>, vector<1024x128xbf16>
    %cst = arith.constant dense<0.000000e+00> : vector<8x128xf32>
    %7 = tpu.matmul %5, %6, %cst {dimension_numbers = #tpu.dot_dimension_numbers<[1], [0], [0], [1], [0, 0, 1, 1], [], []>} : vector<8x1024xbf16>, vector<1024x128xbf16>, vector<8x128xf32> -> vector<8x128xf32>
    %8 = arith.addf %3, %7 : vector<8x128xf32>
    %c0_6 = arith.constant 0 : index
    %c0_7 = arith.constant 0 : index
    %9 = vector.load %arg7[%c0_6, %c0_7] : memref<8x128xf32, #tpu.memory_space<vmem>>, vector<8x128xf32>
    tpu.vector_store %arg7[%c0_6, %c0_7], %8 {strides = array<i32>} : memref<8x128xf32, #tpu.memory_space<vmem>>, vector<8x128xf32>,
    %c0_i32_8 = arith.constant 0 : i32
    %10 = arith.cmpi eq, %arg2, %c0_i32_8 : i32
    %11 = arith.extui %10 : i1 to i32
    %c0_i32_9 = arith.constant 0 : i32
    %12 = arith.cmpi ne, %11, %c0_i32_9 : i32
    scf.if %12 {
      %c0_10 = arith.constant 0 : index
      %c0_11 = arith.constant 0 : index
      %13 = vector.load %arg7[%c0_10, %c0_11] : memref<8x128xf32, #tpu.memory_space<vmem>>, vector<8x128xf32>
      %c0_12 = arith.constant 0 : index
      %14 = memref.load %arg3[%c0_12] : memref<1xf32, #tpu.memory_space<smem>>
      %cst_13 = arith.constant 1.000000e+00 : f32
      %15 = arith.divf %cst_13, %14 : f32
      %16 = vector.broadcast %15 : f32 to vector<8x128xf32>
      %17 = arith.mulf %13, %16 : vector<8x128xf32>
      %c0_14 = arith.constant 0 : index
      %c0_15 = arith.constant 0 : index
      %18 = vector.load %arg7[%c0_14, %c0_15] : memref<8x128xf32, #tpu.memory_space<vmem>>, vector<8x128xf32>
      tpu.vector_store %arg7[%c0_14, %c0_15], %17 {strides = array<i32>} : memref<8x128xf32, #tpu.memory_space<vmem>>, vector<8x128xf32>,
    } else {
    }
    return
  }
  func.func @transform_0(%arg0: i32, %arg1: i32, %arg2: i32, %arg3: memref<1xf32, #tpu.memory_space<smem>>) -> (i32, i32) {
    %c0_i32 = arith.constant 0 : i32
    return %arg0, %arg2 : i32, i32
  }
  func.func @transform_1(%arg0: i32, %arg1: i32, %arg2: i32, %arg3: memref<1xf32, #tpu.memory_space<smem>>) -> (i32, i32) {
    %c0_i32 = arith.constant 0 : i32
    return %arg2, %arg1 : i32, i32
  }
  func.func @transform_2(%arg0: i32, %arg1: i32, %arg2: i32, %arg3: memref<1xf32, #tpu.memory_space<smem>>) -> (i32, i32) {
    %c0_i32 = arith.constant 0 : i32
    %c0_i32_0 = arith.constant 0 : i32
    return %c0_i32, %arg1 : i32, i32
  }
  func.func @transform_3(%arg0: i32, %arg1: i32, %arg2: i32, %arg3: memref<1xf32, #tpu.memory_space<smem>>) -> (i32, i32) {
    %c0_i32 = arith.constant 0 : i32
    return %arg0, %arg1 : i32, i32
  }
}

</mosaic_0001>

<llo_original>
// kernel: forward.1
$region0: #{forward.1}
  #allocation0 [shape = 'u32[]', space=smem, size = 0x4, offset = 0x4, fixed_abs, tag = 'smem constant byte address 0x4 - core index']
  #allocation1 [shape = 'u32[144,128]{1,0:T(1,128)}', space=vmem, size = 0x12000, scoped, tag = 'internal scratch']
  #allocation2 [shape = 's32[1]{0}', space=sflag, size = 0x4, scoped, tag = 'scoped memory for forward.1']
  #allocation3 [shape = 'f32[1]{0:T(128)S(6)}', space=smem, size = 0x200, scoped, tag = 'prefetched SMEM operand 0']
  %s0 = inlined_call_operand.<no memory space> [shape: f32[1], index: 0, kind: input, shape index: {}]
  %s1 = inlined_call_operand.vmem [shape: f32[8,1024], index: 1, kind: input, shape index: {}]
  %s2 = inlined_call_operand.hbm [shape: bf16[1024,128], index: 2, kind: input, shape index: {}]
  %s3 = inlined_call_operand.vmem [shape: f32[1,128], index: 3, kind: input, shape index: {}]
  %s4 = inlined_call_operand.vmem [shape: f32[8,128], index: 4, kind: output, shape index: {}]
  %s5 = sld [smem:[#allocation0]]
  $region34: #{forward.1} parent=0
    _
  %s7 = ssub.s32 1, %s5
  %s8 = scalar_select 0, %s7, %s5
  %9 = sst [smem:[#allocation3]] %s0
  $region1: #{forward.1} parent=0
    #allocation4 [shape = 'u8[262144]{0}', space=vmem, size = 0x40000, scoped, tag = 'input window, operand 2, single buffered']
    #allocation5 [shape = 's32[1]{0}', space=sflag, size = 0x4, scoped, tag = 'scoped memory for forward.1']
    %10 = vsyncpa [#allocation5], 0
    // Predicated region
    $region2: #{forward.1} parent=1 // pred_check
      _
    $region3: #{forward.1} parent=1 // pred_check_branch
      %12 = sbr.rel (0) target = $region5
    $region4: #{forward.1} parent=1 // pred_region
      _
    $region5: #{forward.1} parent=1 // pred_fallthru
      _
    // Predicated region
    $region6: #{forward.1} parent=1 // pred_check
      _
    $region7: #{forward.1} parent=1 // pred_check_branch
      %14 = sbr.rel (0) target = $region9
    $region8: #{forward.1} parent=1 // pred_region
      %s16 = ssub.s32 8192, 8192
      %17 = vsyncadd [#allocation5], %s16
      %s18 = sshll.u32 [#allocation4], 4
      %s19 = int_to_ptr.vmem [resolvable:$true] %s18
      %24 = dma.hbm_to_vmem [thread:$0]  %s2, 8192, %s19, [#allocation5], 64, 64, 4
    $region9: #{forward.1} parent=1 // pred_fallthru
      _
    // Predicated region
    $region10: #{forward.1} parent=1 // pred_check
      _
    $region11: #{forward.1} parent=1 // pred_check_branch
      %26 = sbr.rel (0) target = $region13
    $region12: #{forward.1} parent=1 // pred_region
      _
    $region13: #{forward.1} parent=1 // pred_fallthru
      _
    // Predicated region
    $region14: #{forward.1} parent=1 // pred_check
      _
    $region15: #{forward.1} parent=1 // pred_check_branch
      %28 = sbr.rel (0) target = $region17
    $region16: #{forward.1} parent=1 // pred_region
      %29 = dma.done [#allocation5], 8192
    $region17: #{forward.1} parent=1 // pred_fallthru
      _
    %p31 = scmp.eq.s32.totalorder 0, 0
    // Predicated region
    $region18: #{forward.1} parent=1 // pred_check
      %p32 = pneg %p31
    $region19: #{forward.1} parent=1 // pred_check_branch
      %34 = sbr.rel (%p32) target = $region21
    $region20: #{forward.1} parent=1 // pred_region
      %v35 = vld [vmem:[%s3] sm:$0x1]
      %v37 = vlaneseq
      %v38 = vshrl.u32 %v37, 7
      %v39 = vsub.s32 0, %v38
      %v40 = vrot.slane %v35, %v39
      %42 = vst [vmem:[%s4] sm:$0xff] %v40
    $region21: #{forward.1} parent=1 // pred_fallthru
      _
    %v43 = vld [vmem:[%s4] sm:$0xff]
    %v44 = vld [vmem:[%s1] sm:$0xff]
    %v45 = vld [vmem:[%s1 + $0x8] sm:$0xff]
    %v46 = vld [vmem:[%s1 + $0x10] sm:$0xff]
    %v47 = vld [vmem:[%s1 + $0x18] sm:$0xff]
    %v48 = vld [vmem:[%s1 + $0x20] sm:$0xff]
    %v49 = vld [vmem:[%s1 + $0x28] sm:$0xff]
    %v50 = vld [vmem:[%s1 + $0x30] sm:$0xff]
    %v51 = vld [vmem:[%s1 + $0x38] sm:$0xff]
    %v52 = vpack.c.bf16 %v44, %v44
    %v53 = vpack.c.bf16 %v45, %v45
    %v54 = vpack.c.bf16 %v46, %v46
    %v55 = vpack.c.bf16 %v47, %v47
    %v56 = vpack.c.bf16 %v48, %v48
    %v57 = vpack.c.bf16 %v49, %v49
    %v58 = vpack.c.bf16 %v50, %v50
    %v59 = vpack.c.bf16 %v51, %v51
    %v60 = vld [vmem:[#allocation4] sm:$0xf]
    %v61 = vld [vmem:[#allocation4 + $0x4] sm:$0xf]
    %v62 = vld [vmem:[#allocation4 + $0x8] sm:$0xf]
    %v63 = vld [vmem:[#allocation4 + $0xc] sm:$0xf]
    %v64 = vld [vmem:[#allocation4 + $0x10] sm:$0xf]
    %v65 = vld [vmem:[#allocation4 + $0x14] sm:$0xf]
    %v66 = vld [vmem:[#allocation4 + $0x18] sm:$0xf]
    %v67 = vld [vmem:[#allocation4 + $0x1c] sm:$0xf]
    %v68 = vld [vmem:[#allocation4 + $0x20] sm:$0xf]
    %v69 = vld [vmem:[#allocation4 + $0x24] sm:$0xf]
    %v70 = vld [vmem:[#allocation4 + $0x28] sm:$0xf]
    %v71 = vld [vmem:[#allocation4 + $0x2c] sm:$0xf]
    %v72 = vld [vmem:[#allocation4 + $0x30] sm:$0xf]
    %v73 = vld [vmem:[#allocation4 + $0x34] sm:$0xf]
    %v74 = vld [vmem:[#allocation4 + $0x38] sm:$0xf]
    %v75 = vld [vmem:[#allocation4 + $0x3c] sm:$0xf]
    %v76 = vld [vmem:[#allocation4 + $0x40] sm:$0xf]
    %v77 = vld [vmem:[#allocation4 + $0x44] sm:$0xf]
    %v78 = vld [vmem:[#allocation4 + $0x48] sm:$0xf]
    %v79 = vld [vmem:[#allocation4 + $0x4c] sm:$0xf]
    %v80 = vld [vmem:[#allocation4 + $0x50] sm:$0xf]
    %v81 = vld [vmem:[#allocation4 + $0x54] sm:$0xf]
    %v82 = vld [vmem:[#allocation4 + $0x58] sm:$0xf]
    %v83 = vld [vmem:[#allocation4 + $0x5c] sm:$0xf]
    %v84 = vld [vmem:[#allocation4 + $0x60] sm:$0xf]
    %v85 = vld [vmem:[#allocation4 + $0x64] sm:$0xf]
    %v86 = vld [vmem:[#allocation4 + $0x68] sm:$0xf]
    %v87 = vld [vmem:[#allocation4 + $0x6c] sm:$0xf]
    %v88 = vld [vmem:[#allocation4 + $0x70] sm:$0xf]
    %v89 = vld [vmem:[#allocation4 + $0x74] sm:$0xf]
    %v90 = vld [vmem:[#allocation4 + $0x78] sm:$0xf]
    %v91 = vld [vmem:[#allocation4 + $0x7c] sm:$0xf]
    %v92 = vld [vmem:[#allocation4 + $0x80] sm:$0xf]
    %v93 = vld [vmem:[#allocation4 + $0x84] sm:$0xf]
    %v94 = vld [vmem:[#allocation4 + $0x88] sm:$0xf]
    %v95 = vld [vmem:[#allocation4 + $0x8c] sm:$0xf]
    %v96 = vld [vmem:[#allocation4 + $0x90] sm:$0xf]
    %v97 = vld [vmem:[#allocation4 + $0x94] sm:$0xf]
    %v98 = vld [vmem:[#allocation4 + $0x98] sm:$0xf]
    %v99 = vld [vmem:[#allocation4 + $0x9c] sm:$0xf]
    %v100 = vld [vmem:[#allocation4 + $0xa0] sm:$0xf]
    %v101 = vld [vmem:[#allocation4 + $0xa4] sm:$0xf]
    %v102 = vld [vmem:[#allocation4 + $0xa8] sm:$0xf]
    %v103 = vld [vmem:[#allocation4 + $0xac] sm:$0xf]
    %v104 = vld [vmem:[#allocation4 + $0xb0] sm:$0xf]
    %v105 = vld [vmem:[#allocation4 + $0xb4] sm:$0xf]
    %v106 = vld [vmem:[#allocation4 + $0xb8] sm:$0xf]
    %v107 = vld [vmem:[#allocation4 + $0xbc] sm:$0xf]
    %v108 = vld [vmem:[#allocation4 + $0xc0] sm:$0xf]
    %v109 = vld [vmem:[#allocation4 + $0xc4] sm:$0xf]
    %v110 = vld [vmem:[#allocation4 + $0xc8] sm:$0xf]
    %v111 = vld [vmem:[#allocation4 + $0xcc] sm:$0xf]
    %v112 = vld [vmem:[#allocation4 + $0xd0] sm:$0xf]
    %v113 = vld [vmem:[#allocation4 + $0xd4] sm:$0xf]
    %v114 = vld [vmem:[#allocation4 + $0xd8] sm:$0xf]
    %v115 = vld [vmem:[#allocation4 + $0xdc] sm:$0xf]
    %v116 = vld [vmem:[#allocation4 + $0xe0] sm:$0xf]
    %v117 = vld [vmem:[#allocation4 + $0xe4] sm:$0xf]
    %v118 = vld [vmem:[#allocation4 + $0xe8] sm:$0xf]
    %v119 = vld [vmem:[#allocation4 + $0xec] sm:$0xf]
    %v120 = vld [vmem:[#allocation4 + $0xf0] sm:$0xf]
    %v121 = vld [vmem:[#allocation4 + $0xf4] sm:$0xf]
    %v122 = vld [vmem:[#allocation4 + $0xf8] sm:$0xf]
    %v123 = vld [vmem:[#allocation4 + $0xfc] sm:$0xf]
    %v124 = vld [vmem:[#allocation4 + $0x100] sm:$0xf]
    %v125 = vld [vmem:[#allocation4 + $0x104] sm:$0xf]
    %v126 = vld [vmem:[#allocation4 + $0x108] sm:$0xf]
    %v127 = vld [vmem:[#allocation4 + $0x10c] sm:$0xf]
    %v128 = vld [vmem:[#allocation4 + $0x110] sm:$0xf]
    %v129 = vld [vmem:[#allocation4 + $0x114] sm:$0xf]
    %v130 = vld [vmem:[#allocation4 + $0x118] sm:$0xf]
    %v131 = vld [vmem:[#allocation4 + $0x11c] sm:$0xf]
    %v132 = vld [vmem:[#allocation4 + $0x120] sm:$0xf]
    %v133 = vld [vmem:[#allocation4 + $0x124] sm:$0xf]
    %v134 = vld [vmem:[#allocation4 + $0x128] sm:$0xf]
    %v135 = vld [vmem:[#allocation4 + $0x12c] sm:$0xf]
    %v136 = vld [vmem:[#allocation4 + $0x130] sm:$0xf]
    %v137 = vld [vmem:[#allocation4 + $0x134] sm:$0xf]
    %v138 = vld [vmem:[#allocation4 + $0x138] sm:$0xf]
    %v139 = vld [vmem:[#allocation4 + $0x13c] sm:$0xf]
    %v140 = vld [vmem:[#allocation4 + $0x140] sm:$0xf]
    %v141 = vld [vmem:[#allocation4 + $0x144] sm:$0xf]
    %v142 = vld [vmem:[#allocation4 + $0x148] sm:$0xf]
    %v143 = vld [vmem:[#allocation4 + $0x14c] sm:$0xf]
    %v144 = vld [vmem:[#allocation4 + $0x150] sm:$0xf]
    %v145 = vld [vmem:[#allocation4 + $0x154] sm:$0xf]
    %v146 = vld [vmem:[#allocation4 + $0x158] sm:$0xf]
    %v147 = vld [vmem:[#allocation4 + $0x15c] sm:$0xf]
    %v148 = vld [vmem:[#allocation4 + $0x160] sm:$0xf]
    %v149 = vld [vmem:[#allocation4 + $0x164] sm:$0xf]
    %v150 = vld [vmem:[#allocation4 + $0x168] sm:$0xf]
    %v151 = vld [vmem:[#allocation4 + $0x16c] sm:$0xf]
    %v152 = vld [vmem:[#allocation4 + $0x170] sm:$0xf]
    %v153 = vld [vmem:[#allocation4 + $0x174] sm:$0xf]
    %v154 = vld [vmem:[#allocation4 + $0x178] sm:$0xf]
    %v155 = vld [vmem:[#allocation4 + $0x17c] sm:$0xf]
    %v156 = vld [vmem:[#allocation4 + $0x180] sm:$0xf]
    %v157 = vld [vmem:[#allocation4 + $0x184] sm:$0xf]
    %v158 = vld [vmem:[#allocation4 + $0x188] sm:$0xf]
    %v159 = vld [vmem:[#allocation4 + $0x18c] sm:$0xf]
    %v160 = vld [vmem:[#allocation4 + $0x190] sm:$0xf]
    %v161 = vld [vmem:[#allocation4 + $0x194] sm:$0xf]
    %v162 = vld [vmem:[#allocation4 + $0x198] sm:$0xf]
    %v163 = vld [vmem:[#allocation4 + $0x19c] sm:$0xf]
    %v164 = vld [vmem:[#allocation4 + $0x1a0] sm:$0xf]
    %v165 = vld [vmem:[#allocation4 + $0x1a4] sm:$0xf]
    %v166 = vld [vmem:[#allocation4 + $0x1a8] sm:$0xf]
    %v167 = vld [vmem:[#allocation4 + $0x1ac] sm:$0xf]
    %v168 = vld [vmem:[#allocation4 + $0x1b0] sm:$0xf]
    %v169 = vld [vmem:[#allocation4 + $0x1b4] sm:$0xf]
    %v170 = vld [vmem:[#allocation4 + $0x1b8] sm:$0xf]
    %v171 = vld [vmem:[#allocation4 + $0x1bc] sm:$0xf]
    %v172 = vld [vmem:[#allocation4 + $0x1c0] sm:$0xf]
    %v173 = vld [vmem:[#allocation4 + $0x1c4] sm:$0xf]
    %v174 = vld [vmem:[#allocation4 + $0x1c8] sm:$0xf]
    %v175 = vld [vmem:[#allocation4 + $0x1cc] sm:$0xf]
    %v176 = vld [vmem:[#allocation4 + $0x1d0] sm:$0xf]
    %v177 = vld [vmem:[#allocation4 + $0x1d4] sm:$0xf]
    %v178 = vld [vmem:[#allocation4 + $0x1d8] sm:$0xf]
    %v179 = vld [vmem:[#allocation4 + $0x1dc] sm:$0xf]
    %v180 = vld [vmem:[#allocation4 + $0x1e0] sm:$0xf]
    %v181 = vld [vmem:[#allocation4 + $0x1e4] sm:$0xf]
    %v182 = vld [vmem:[#allocation4 + $0x1e8] sm:$0xf]
    %v183 = vld [vmem:[#allocation4 + $0x1ec] sm:$0xf]
    %v184 = vld [vmem:[#allocation4 + $0x1f0] sm:$0xf]
    %v185 = vld [vmem:[#allocation4 + $0x1f4] sm:$0xf]
    %v186 = vld [vmem:[#allocation4 + $0x1f8] sm:$0xf]
    %v187 = vld [vmem:[#allocation4 + $0x1fc] sm:$0xf]
    %v316 = vunpack.c.l.b16 %v60
    %v317 = vunpack.c.l.b16 %v61
    %v318 = vunpack.c.l.b16 %v62
    %v319 = vunpack.c.l.b16 %v63
    %v320 = vunpack.c.l.b16 %v64
    %v321 = vunpack.c.l.b16 %v65
    %v322 = vunpack.c.l.b16 %v66
    %v323 = vunpack.c.l.b16 %v67
    %v324 = vunpack.c.l.b16 %v68
    %v325 = vunpack.c.l.b16 %v69
    %v326 = vunpack.c.l.b16 %v70
    %v327 = vunpack.c.l.b16 %v71
    %v328 = vunpack.c.l.b16 %v72
    %v329 = vunpack.c.l.b16 %v73
    %v330 = vunpack.c.l.b16 %v74
    %v331 = vunpack.c.l.b16 %v75
    %v332 = vunpack.c.l.b16 %v76
    %v333 = vunpack.c.l.b16 %v77
    %v334 = vunpack.c.l.b16 %v78
    %v335 = vunpack.c.l.b16 %v79
    %v336 = vunpack.c.l.b16 %v80
    %v337 = vunpack.c.l.b16 %v81
    %v338 = vunpack.c.l.b16 %v82
    %v339 = vunpack.c.l.b16 %v83
    %v340 = vunpack.c.l.b16 %v84
    %v341 = vunpack.c.l.b16 %v85
    %v342 = vunpack.c.l.b16 %v86
    %v343 = vunpack.c.l.b16 %v87
    %v344 = vunpack.c.l.b16 %v88
    %v345 = vunpack.c.l.b16 %v89
    %v346 = vunpack.c.l.b16 %v90
    %v347 = vunpack.c.l.b16 %v91
    %v348 = vunpack.c.l.b16 %v92
    %v349 = vunpack.c.l.b16 %v93
    %v350 = vunpack.c.l.b16 %v94
    %v351 = vunpack.c.l.b16 %v95
    %v352 = vunpack.c.l.b16 %v96
    %v353 = vunpack.c.l.b16 %v97
    %v354 = vunpack.c.l.b16 %v98
    %v355 = vunpack.c.l.b16 %v99
    %v356 = vunpack.c.l.b16 %v100
    %v357 = vunpack.c.l.b16 %v101
    %v358 = vunpack.c.l.b16 %v102
    %v359 = vunpack.c.l.b16 %v103
    %v360 = vunpack.c.l.b16 %v104
    %v361 = vunpack.c.l.b16 %v105
    %v362 = vunpack.c.l.b16 %v106
    %v363 = vunpack.c.l.b16 %v107
    %v364 = vunpack.c.l.b16 %v108
    %v365 = vunpack.c.l.b16 %v109
    %v366 = vunpack.c.l.b16 %v110
    %v367 = vunpack.c.l.b16 %v111
    %v368 = vunpack.c.l.b16 %v112
    %v369 = vunpack.c.l.b16 %v113
    %v370 = vunpack.c.l.b16 %v114
    %v371 = vunpack.c.l.b16 %v115
    %v372 = vunpack.c.l.b16 %v116
    %v373 = vunpack.c.l.b16 %v117
    %v374 = vunpack.c.l.b16 %v118
    %v375 = vunpack.c.l.b16 %v119
    %v376 = vunpack.c.l.b16 %v120
    %v377 = vunpack.c.l.b16 %v121
    %v378 = vunpack.c.l.b16 %v122
    %v379 = vunpack.c.l.b16 %v123
    %v380 = vunpack.c.l.b16 %v124
    %v381 = vunpack.c.l.b16 %v125
    %v382 = vunpack.c.l.b16 %v126
    %v383 = vunpack.c.l.b16 %v127
    %v384 = vunpack.c.l.b16 %v128
    %v385 = vunpack.c.l.b16 %v129
    %v386 = vunpack.c.l.b16 %v130
    %v387 = vunpack.c.l.b16 %v131
    %v388 = vunpack.c.l.b16 %v132
    %v389 = vunpack.c.l.b16 %v133
    %v390 = vunpack.c.l.b16 %v134
    %v391 = vunpack.c.l.b16 %v135
    %v392 = vunpack.c.l.b16 %v136
    %v393 = vunpack.c.l.b16 %v137
    %v394 = vunpack.c.l.b16 %v138
    %v395 = vunpack.c.l.b16 %v139
    %v396 = vunpack.c.l.b16 %v140
    %v397 = vunpack.c.l.b16 %v141
    %v398 = vunpack.c.l.b16 %v142
    %v399 = vunpack.c.l.b16 %v143
    %v400 = vunpack.c.l.b16 %v144
    %v401 = vunpack.c.l.b16 %v145
    %v402 = vunpack.c.l.b16 %v146
    %v403 = vunpack.c.l.b16 %v147
    %v404 = vunpack.c.l.b16 %v148
    %v405 = vunpack.c.l.b16 %v149
    %v406 = vunpack.c.l.b16 %v150
    %v407 = vunpack.c.l.b16 %v151
    %v408 = vunpack.c.l.b16 %v152
    %v409 = vunpack.c.l.b16 %v153
    %v410 = vunpack.c.l.b16 %v154
    %v411 = vunpack.c.l.b16 %v155
    %v412 = vunpack.c.l.b16 %v156
    %v413 = vunpack.c.l.b16 %v157
    %v414 = vunpack.c.l.b16 %v158
    %v415 = vunpack.c.l.b16 %v159
    %v416 = vunpack.c.l.b16 %v160
    %v417 = vunpack.c.l.b16 %v161
    %v418 = vunpack.c.l.b16 %v162
    %v419 = vunpack.c.l.b16 %v163
    %v420 = vunpack.c.l.b16 %v164
    %v421 = vunpack.c.l.b16 %v165
    %v422 = vunpack.c.l.b16 %v166
    %v423 = vunpack.c.l.b16 %v167
    %v424 = vunpack.c.l.b16 %v168
    %v425 = vunpack.c.l.b16 %v169
    %v426 = vunpack.c.l.b16 %v170
    %v427 = vunpack.c.l.b16 %v171
    %v428 = vunpack.c.l.b16 %v172
    %v429 = vunpack.c.l.b16 %v173
    %v430 = vunpack.c.l.b16 %v174
    %v431 = vunpack.c.l.b16 %v175
    %v432 = vunpack.c.l.b16 %v176
    %v433 = vunpack.c.l.b16 %v177
    %v434 = vunpack.c.l.b16 %v178
    %v435 = vunpack.c.l.b16 %v179
    %v436 = vunpack.c.l.b16 %v180
    %v437 = vunpack.c.l.b16 %v181
    %v438 = vunpack.c.l.b16 %v182
    %v439 = vunpack.c.l.b16 %v183
    %v440 = vunpack.c.l.b16 %v184
    %v441 = vunpack.c.l.b16 %v185
    %v442 = vunpack.c.l.b16 %v186
    %v443 = vunpack.c.l.b16 %v187
    %v444 = vpack.c.b16 %v317, %v316
    %v445 = vpack.c.b16 %v319, %v318
    %v446 = vpack.c.b16 %v321, %v320
    %v447 = vpack.c.b16 %v323, %v322
    %v448 = vpack.c.b16 %v325, %v324
    %v449 = vpack.c.b16 %v327, %v326
    %v450 = vpack.c.b16 %v329, %v328
    %v451 = vpack.c.b16 %v331, %v330
    %v452 = vpack.c.b16 %v333, %v332
    %v453 = vpack.c.b16 %v335, %v334
    %v454 = vpack.c.b16 %v337, %v336
    %v455 = vpack.c.b16 %v339, %v338
    %v456 = vpack.c.b16 %v341, %v340
    %v457 = vpack.c.b16 %v343, %v342
    %v458 = vpack.c.b16 %v345, %v344
    %v459 = vpack.c.b16 %v347, %v346
    %v460 = vpack.c.b16 %v349, %v348
    %v461 = vpack.c.b16 %v351, %v350
    %v462 = vpack.c.b16 %v353, %v352
    %v463 = vpack.c.b16 %v355, %v354
    %v464 = vpack.c.b16 %v357, %v356
    %v465 = vpack.c.b16 %v359, %v358
    %v466 = vpack.c.b16 %v361, %v360
    %v467 = vpack.c.b16 %v363, %v362
    %v468 = vpack.c.b16 %v365, %v364
    %v469 = vpack.c.b16 %v367, %v366
    %v470 = vpack.c.b16 %v369, %v368
    %v471 = vpack.c.b16 %v371, %v370
    %v472 = vpack.c.b16 %v373, %v372
    %v473 = vpack.c.b16 %v375, %v374
    %v474 = vpack.c.b16 %v377, %v376
    %v475 = vpack.c.b16 %v379, %v378
    %v476 = vpack.c.b16 %v381, %v380
    %v477 = vpack.c.b16 %v383, %v382
    %v478 = vpack.c.b16 %v385, %v384
    %v479 = vpack.c.b16 %v387, %v386
    %v480 = vpack.c.b16 %v389, %v388
    %v481 = vpack.c.b16 %v391, %v390
    %v482 = vpack.c.b16 %v393, %v392
    %v483 = vpack.c.b16 %v395, %v394
    %v484 = vpack.c.b16 %v397, %v396
    %v485 = vpack.c.b16 %v399, %v398
    %v486 = vpack.c.b16 %v401, %v400
    %v487 = vpack.c.b16 %v403, %v402
    %v488 = vpack.c.b16 %v405, %v404
    %v489 = vpack.c.b16 %v407, %v406
    %v490 = vpack.c.b16 %v409, %v408
    %v491 = vpack.c.b16 %v411, %v410
    %v492 = vpack.c.b16 %v413, %v412
    %v493 = vpack.c.b16 %v415, %v414
    %v494 = vpack.c.b16 %v417, %v416
    %v495 = vpack.c.b16 %v419, %v418
    %v496 = vpack.c.b16 %v421, %v420
    %v497 = vpack.c.b16 %v423, %v422
    %v498 = vpack.c.b16 %v425, %v424
    %v499 = vpack.c.b16 %v427, %v426
    %v500 = vpack.c.b16 %v429, %v428
    %v501 = vpack.c.b16 %v431, %v430
    %v502 = vpack.c.b16 %v433, %v432
    %v503 = vpack.c.b16 %v435, %v434
    %v504 = vpack.c.b16 %v437, %v436
    %v505 = vpack.c.b16 %v439, %v438
    %v506 = vpack.c.b16 %v441, %v440
    %v507 = vpack.c.b16 %v443, %v442
    %572 = vmatprep.subr.bf16.mxu0 0
    %573 = vmatpush1.bf16.msra.mxu0 %v444
    %574 = vmatprep.subr.bf16.mxu0 0
    %575 = vmatpush1.bf16.msra.mxu0 %v445
    %576 = vmatprep.subr.bf16.mxu0 0
    %577 = vmatpush1.bf16.msra.mxu0 %v446
    %578 = vmatprep.subr.bf16.mxu0 0
    %579 = vmatpush1.bf16.msra.mxu0 %v447
    %580 = vmatprep.subr.bf16.mxu0 0
    %581 = vmatpush1.bf16.msra.mxu0 %v448
    %582 = vmatprep.subr.bf16.mxu0 0
    %583 = vmatpush1.bf16.msra.mxu0 %v449
    %584 = vmatprep.subr.bf16.mxu0 0
    %585 = vmatpush1.bf16.msra.mxu0 %v450
    %586 = vmatprep.subr.bf16.mxu0 0
    %587 = vmatpush1.bf16.msra.mxu0 %v451
    %588 = vmatprep.subr.bf16.mxu0 0
    %589 = vmatpush1.bf16.msra.mxu0 %v452
    %590 = vmatprep.subr.bf16.mxu0 0
    %591 = vmatpush1.bf16.msra.mxu0 %v453
    %592 = vmatprep.subr.bf16.mxu0 0
    %593 = vmatpush1.bf16.msra.mxu0 %v454
    %594 = vmatprep.subr.bf16.mxu0 0
    %595 = vmatpush1.bf16.msra.mxu0 %v455
    %596 = vmatprep.subr.bf16.mxu0 0
    %597 = vmatpush1.bf16.msra.mxu0 %v456
    %598 = vmatprep.subr.bf16.mxu0 0
    %599 = vmatpush1.bf16.msra.mxu0 %v457
    %600 = vmatprep.subr.bf16.mxu0 0
    %601 = vmatpush1.bf16.msra.mxu0 %v458
    %602 = vmatprep.subr.bf16.mxu0 0
    %603 = vmatpush1.bf16.msra.mxu0 %v459
    %604 = vmatprep.mubr.bf16.mxu0 %v53
    %605 = vmatmul.mubr.bf16.gmra.mrb[0].mxu0 %v52
    %v606 = vpop.f32.mrb[0].mxu0
    %v607 = vadd.f32 0.0, %v606
    %v608 = vpop.f32.mrb[0].mxu0
    %v609 = vpop.f32.mrb[0].mxu0
    %v610 = vpop.f32.mrb[0].mxu0
    %611 = vdwg.mxu0
    %612 = vmatprep.subr.bf16.mxu0 0
    %613 = vmatpush1.bf16.msra.mxu0 %v460
    %614 = vmatprep.subr.bf16.mxu0 0
    %615 = vmatpush1.bf16.msra.mxu0 %v461
    %616 = vmatprep.subr.bf16.mxu0 0
    %617 = vmatpush1.bf16.msra.mxu0 %v462
    %618 = vmatprep.subr.bf16.mxu0 0
    %619 = vmatpush1.bf16.msra.mxu0 %v463
    %620 = vmatprep.subr.bf16.mxu0 0
    %621 = vmatpush1.bf16.msra.mxu0 %v464
    %622 = vmatprep.subr.bf16.mxu0 0
    %623 = vmatpush1.bf16.msra.mxu0 %v465
    %624 = vmatprep.subr.bf16.mxu0 0
    %625 = vmatpush1.bf16.msra.mxu0 %v466
    %626 = vmatprep.subr.bf16.mxu0 0
    %627 = vmatpush1.bf16.msra.mxu0 %v467
    %628 = vmatprep.subr.bf16.mxu0 0
    %629 = vmatpush1.bf16.msra.mxu0 %v468
    %630 = vmatprep.subr.bf16.mxu0 0
    %631 = vmatpush1.bf16.msra.mxu0 %v469
    %632 = vmatprep.subr.bf16.mxu0 0
    %633 = vmatpush1.bf16.msra.mxu0 %v470
    %634 = vmatprep.subr.bf16.mxu0 0
    %635 = vmatpush1.bf16.msra.mxu0 %v471
    %636 = vmatprep.subr.bf16.mxu0 0
    %637 = vmatpush1.bf16.msra.mxu0 %v472
    %638 = vmatprep.subr.bf16.mxu0 0
    %639 = vmatpush1.bf16.msra.mxu0 %v473
    %640 = vmatprep.subr.bf16.mxu0 0
    %641 = vmatpush1.bf16.msra.mxu0 %v474
    %642 = vmatprep.subr.bf16.mxu0 0
    %643 = vmatpush1.bf16.msra.mxu0 %v475
    %644 = vmatprep.mubr.bf16.mxu0 %v55
    %645 = vmatmul.mubr.bf16.gmra.mrb[0].mxu0 %v54
    %v646 = vpop.f32.mrb[0].mxu0
    %v647 = vadd.f32 %v607, %v646
    %v648 = vpop.f32.mrb[0].mxu0
    %v649 = vpop.f32.mrb[0].mxu0
    %v650 = vpop.f32.mrb[0].mxu0
    %651 = vdwg.mxu0
    %652 = vmatprep.subr.bf16.mxu0 0
    %653 = vmatpush1.bf16.msra.mxu0 %v476
    %654 = vmatprep.subr.bf16.mxu0 0
    %655 = vmatpush1.bf16.msra.mxu0 %v477
    %656 = vmatprep.subr.bf16.mxu0 0
    %657 = vmatpush1.bf16.msra.mxu0 %v478
    %658 = vmatprep.subr.bf16.mxu0 0
    %659 = vmatpush1.bf16.msra.mxu0 %v479
    %660 = vmatprep.subr.bf16.mxu0 0
    %661 = vmatpush1.bf16.msra.mxu0 %v480
    %662 = vmatprep.subr.bf16.mxu0 0
    %663 = vmatpush1.bf16.msra.mxu0 %v481
    %664 = vmatprep.subr.bf16.mxu0 0
    %665 = vmatpush1.bf16.msra.mxu0 %v482
    %666 = vmatprep.subr.bf16.mxu0 0
    %667 = vmatpush1.bf16.msra.mxu0 %v483
    %668 = vmatprep.subr.bf16.mxu0 0
    %669 = vmatpush1.bf16.msra.mxu0 %v484
    %670 = vmatprep.subr.bf16.mxu0 0
    %671 = vmatpush1.bf16.msra.mxu0 %v485
    %672 = vmatprep.subr.bf16.mxu0 0
    %673 = vmatpush1.bf16.msra.mxu0 %v486
    %674 = vmatprep.subr.bf16.mxu0 0
    %675 = vmatpush1.bf16.msra.mxu0 %v487
    %676 = vmatprep.subr.bf16.mxu0 0
    %677 = vmatpush1.bf16.msra.mxu0 %v488
    %678 = vmatprep.subr.bf16.mxu0 0
    %679 = vmatpush1.bf16.msra.mxu0 %v489
    %680 = vmatprep.subr.bf16.mxu0 0
    %681 = vmatpush1.bf16.msra.mxu0 %v490
    %682 = vmatprep.subr.bf16.mxu0 0
    %683 = vmatpush1.bf16.msra.mxu0 %v491
    %684 = vmatprep.mubr.bf16.mxu0 %v57
    %685 = vmatmul.mubr.bf16.gmra.mrb[0].mxu0 %v56
    %v686 = vpop.f32.mrb[0].mxu0
    %v687 = vadd.f32 %v647, %v686
    %v688 = vpop.f32.mrb[0].mxu0
    %v689 = vpop.f32.mrb[0].mxu0
    %v690 = vpop.f32.mrb[0].mxu0
    %691 = vdwg.mxu0
    %692 = vmatprep.subr.bf16.mxu0 0
    %693 = vmatpush1.bf16.msra.mxu0 %v492
    %694 = vmatprep.subr.bf16.mxu0 0
    %695 = vmatpush1.bf16.msra.mxu0 %v493
    %696 = vmatprep.subr.bf16.mxu0 0
    %697 = vmatpush1.bf16.msra.mxu0 %v494
    %698 = vmatprep.subr.bf16.mxu0 0
    %699 = vmatpush1.bf16.msra.mxu0 %v495
    %700 = vmatprep.subr.bf16.mxu0 0
    %701 = vmatpush1.bf16.msra.mxu0 %v496
    %702 = vmatprep.subr.bf16.mxu0 0
    %703 = vmatpush1.bf16.msra.mxu0 %v497
    %704 = vmatprep.subr.bf16.mxu0 0
    %705 = vmatpush1.bf16.msra.mxu0 %v498
    %706 = vmatprep.subr.bf16.mxu0 0
    %707 = vmatpush1.bf16.msra.mxu0 %v499
    %708 = vmatprep.subr.bf16.mxu0 0
    %709 = vmatpush1.bf16.msra.mxu0 %v500
    %710 = vmatprep.subr.bf16.mxu0 0
    %711 = vmatpush1.bf16.msra.mxu0 %v501
    %712 = vmatprep.subr.bf16.mxu0 0
    %713 = vmatpush1.bf16.msra.mxu0 %v502
    %714 = vmatprep.subr.bf16.mxu0 0
    %715 = vmatpush1.bf16.msra.mxu0 %v503
    %716 = vmatprep.subr.bf16.mxu0 0
    %717 = vmatpush1.bf16.msra.mxu0 %v504
    %718 = vmatprep.subr.bf16.mxu0 0
    %719 = vmatpush1.bf16.msra.mxu0 %v505
    %720 = vmatprep.subr.bf16.mxu0 0
    %721 = vmatpush1.bf16.msra.mxu0 %v506
    %722 = vmatprep.subr.bf16.mxu0 0
    %723 = vmatpush1.bf16.msra.mxu0 %v507
    %724 = vmatprep.mubr.bf16.mxu0 %v59
    %725 = vmatmul.mubr.bf16.gmra.mrb[0].mxu0 %v58
    %v726 = vpop.f32.mrb[0].mxu0
    %v727 = vadd.f32 %v687, %v726
    %v728 = vpop.f32.mrb[0].mxu0
    %v729 = vpop.f32.mrb[0].mxu0
    %v730 = vpop.f32.mrb[0].mxu0
    %731 = vdwg.mxu0
    %v732 = vadd.f32 %v43, %v727
    %733 = vst [vmem:[%s4] sm:$0xff] %v732
    // Predicated region
    $region22: #{forward.1} parent=1 // pred_check
      %p734 = pneg %p31
    $region23: #{forward.1} parent=1 // pred_check_branch
      %736 = sbr.rel (%p734) target = $region25
    $region24: #{forward.1} parent=1 // pred_region
      %v737 = vld [vmem:[%s4] sm:$0xff]
      %s738 = sld [smem:[#allocation3]]
      %v739 = vstv %s738
      %v740 = vrcp.pop %v739
      %s741 = vtos %v740
      %v742 = vstv %s741
      %v743 = vmul.f32 %v737, %v742
      %744 = vst [vmem:[%s4] sm:$0xff] %v743
    $region25: #{forward.1} parent=1 // pred_fallthru
      _
    // Predicated region
    $region26: #{forward.1} parent=1 // pred_check
      _
    $region27: #{forward.1} parent=1 // pred_check_branch
      %746 = sbr.rel (0) target = $region29
    $region28: #{forward.1} parent=1 // pred_region
      _
    $region29: #{forward.1} parent=1 // pred_fallthru
      _
    // Predicated region
    $region30: #{forward.1} parent=1 // pred_check
      _
    $region31: #{forward.1} parent=1 // pred_check_branch
      %748 = sbr.rel (0) target = $region33
    $region32: #{forward.1} parent=1 // pred_region
      _
    $region33: #{forward.1} parent=1 // pred_fallthru
      _
    %749 = vsyncpa [#allocation5], 1

</llo_original>
